<compile_context>
chip_gen: v6e
topology: v6e:2x2x1
jax: 0.10.0
libtpu: 0.0.40
codegen_flags: <defaults>
</compile_context>

<pallas_src>
import functools

import jax
import jax.numpy as jnp
from jax.experimental import pallas as pl
from jax.experimental.pallas import tpu as pltpu


def _round_up(x, m):
    return (x + m - 1) // m * m


def _pad_feature(n):
    # Lane-dense padding: 128 minimum; round genuinely-large dims to 256
    # multiples (v6e/v7x MXU is 256x256). Never blow 64 -> 256.
    if n <= 128:
        return 128
    return _round_up(n, 256)


def _choose_tile_b(batch):
    b16 = _round_up(max(batch, 1), 16)
    if b16 <= 256:
        # One grid step, minimal batch padding: at this size the fixed launch
        # overhead dominates, so less padded work is the only lever.
        return b16
    # Large batch: 512-1024 row tiles amortize per-step pipeline overhead;
    # keep >=2 balanced steps so both v7x TensorCores engage.
    return min(1024, _round_up((b16 + 1) // 2, 16))


def _invdyn_kernel(sf_ref, st_ref, w1a_ref, w1b_ref, b1_ref,
                   w2_ref, b2_ref, w3_ref, b3_ref, out_ref):
    # Layer 1: concat([state_from, state_to]) @ W1 fused as two partial
    # matmuls accumulated in f32 (no concat materialization anywhere).
    sf = sf_ref[...].astype(jnp.bfloat16)
    st = st_ref[...].astype(jnp.bfloat16)
    h1 = (jnp.dot(sf, w1a_ref[...], preferred_element_type=jnp.float32)
          + jnp.dot(st, w1b_ref[...], preferred_element_type=jnp.float32)
          + b1_ref[...])
    h1 = jnp.maximum(h1, 0.0)

    # Layer 2 + ReLU (bias add / ReLU stay in f32: VPU-safe on v5e).
    h2 = jnp.dot(h1.astype(jnp.bfloat16), w2_ref[...],
                 preferred_element_type=jnp.float32) + b2_ref[...]
    h2 = jnp.maximum(h2, 0.0)

    # Output layer (linear), lane-dense bf16 store (half the writeback bytes).
    out = jnp.dot(h2.astype(jnp.bfloat16), w3_ref[...],
                  preferred_element_type=jnp.float32) + b3_ref[...]
    out_ref[...] = out.astype(out_ref.dtype)


def inverse_dynamic_forward(state_from, state_to, params, action_size,
                            *, tile_b=None):
    """state_from/state_to: (B, S) f32 -> predicted action (B, action_size) f32."""
    w1a, w1b, b1, w2, b2, w3, b3 = params
    batch, s = state_from.shape
    h_pad = w2.shape[0]
    o_pad = w3.shape[1]

    if tile_b is None:
        tile_b = _choose_tile_b(batch)
    b_pad = _round_up(batch, tile_b)
    if b_pad != batch:
        pad = ((0, b_pad - batch), (0, 0))
        state_from = jnp.pad(state_from, pad)
        state_to = jnp.pad(state_to, pad)

    grid = (b_pad // tile_b,)

    flops = 2 * b_pad * (2 * s * h_pad + h_pad * h_pad + h_pad * o_pad)
    bytes_accessed = (2 * b_pad * s * 4                                 # f32 states
                      + (w1a.size + w1b.size + w2.size + w3.size) * 2   # bf16 weights
                      + (b1.size + b2.size + b3.size) * 4               # f32 biases
                      + b_pad * o_pad * 2)                              # bf16 output

    resident = lambda i: (0, 0)   # weights/biases stay in VMEM across the grid
    out_pad = pl.pallas_call(
        _invdyn_kernel,
        out_shape=jax.ShapeDtypeStruct((b_pad, o_pad), jnp.bfloat16),
        grid=grid,
        in_specs=[
            pl.BlockSpec((tile_b, s), lambda i: (i, 0)),   # state_from tile (pipelined)
            pl.BlockSpec((tile_b, s), lambda i: (i, 0)),   # state_to tile (pipelined)
            pl.BlockSpec(w1a.shape, resident),             # W1a
            pl.BlockSpec(w1b.shape, resident),             # W1b
            pl.BlockSpec(b1.shape, resident),              # b1
            pl.BlockSpec(w2.shape, resident),              # W2
            pl.BlockSpec(b2.shape, resident),              # b2
            pl.BlockSpec(w3.shape, resident),              # W3
            pl.BlockSpec(b3.shape, resident),              # b3
        ],
        out_specs=pl.BlockSpec((tile_b, o_pad), lambda i: (i, 0)),
        compiler_params=pltpu.CompilerParams(
            dimension_semantics=("parallel",),
            vmem_limit_bytes=32 * 1024 * 1024,
        ),
        cost_estimate=pl.CostEstimate(
            flops=flops, transcendentals=0, bytes_accessed=bytes_accessed),
    )(state_from, state_to, w1a, w1b, b1, w2, b2, w3, b3)

    return out_pad[:batch, :action_size].astype(jnp.float32)


def init_params(key, state_size, action_size, dense_n):
    """Padded (lane-dense) bf16 weights + f32 biases. W1 is split into the
    state_from / state_to halves; padding is zero-filled so the padded network
    is exactly equivalent to the unpadded one."""
    k_in = 2 * state_size
    h_pad = _pad_feature(dense_n)
    o_pad = _pad_feature(action_size)

    ks = jax.random.split(key, 6)
    s1 = 1.0 / jnp.sqrt(k_in)
    s2 = 1.0 / jnp.sqrt(dense_n)

    def pad_to(a, shape):
        return jnp.pad(a, [(0, t - s) for s, t in zip(a.shape, shape)])

    w1 = jax.random.uniform(ks[0], (k_in, dense_n), jnp.float32, -s1, s1)
    w1a = pad_to(w1[:state_size], (state_size, h_pad)).astype(jnp.bfloat16)
    w1b = pad_to(w1[state_size:], (state_size, h_pad)).astype(jnp.bfloat16)
    b1 = pad_to(jax.random.uniform(ks[1], (1, dense_n), jnp.float32, -s1, s1),
                (1, h_pad))
    w2 = pad_to(jax.random.uniform(ks[2], (dense_n, dense_n), jnp.float32, -s2, s2),
                (h_pad, h_pad)).astype(jnp.bfloat16)
    b2 = pad_to(jax.random.uniform(ks[3], (1, dense_n), jnp.float32, -s2, s2),
                (1, h_pad))
    w3 = pad_to(jax.random.uniform(ks[4], (dense_n, action_size), jnp.float32, -s2, s2),
                (h_pad, o_pad)).astype(jnp.bfloat16)
    b3 = pad_to(jax.random.uniform(ks[5], (1, action_size), jnp.float32, -s2, s2),
                (1, o_pad))
    return (w1a, w1b, b1, w2, b2, w3, b3)


def inverse_dynamic_reference(state_from, state_to, params, action_size):
    """Pure-JAX reference with the same bf16-input / f32-accumulate math."""
    w1a, w1b, b1, w2, b2, w3, b3 = params
    sf = state_from.astype(jnp.bfloat16)
    st = state_to.astype(jnp.bfloat16)
    h1 = jnp.maximum(
        jnp.dot(sf, w1a, preferred_element_type=jnp.float32)
        + jnp.dot(st, w1b, preferred_element_type=jnp.float32) + b1, 0.0)
    h2 = jnp.maximum(
        jnp.dot(h1.astype(jnp.bfloat16), w2,
                preferred_element_type=jnp.float32) + b2, 0.0)
    out = jnp.dot(h2.astype(jnp.bfloat16), w3,
                  preferred_element_type=jnp.float32) + b3
    return out[:, :action_size].astype(jnp.float32)


if __name__ == "__main__":
    state_size = 32
    action_size = 8
    dense_n = 64
    batch = 8

    key = jax.random.PRNGKey(0)
    k_from, k_to, k_params = jax.random.split(key, 3)

    state_from = jax.random.normal(k_from, (batch, state_size), jnp.float32)
    state_to = jax.random.normal(k_to, (batch, state_size), jnp.float32)
    params = init_params(k_params, state_size, action_size, dense_n)

    fwd = jax.jit(functools.partial(inverse_dynamic_forward,
                                    action_size=action_size))
    out = jax.block_until_ready(fwd(state_from, state_to, params))

    ref = inverse_dynamic_reference(state_from, state_to, params, action_size)
    assert out.shape == (batch, action_size)
    assert jnp.allclose(out, ref, atol=2e-2, rtol=2e-2), "mismatch vs reference"

    print("KERNEL_OK")
</pallas_src>

<mosaic_0001>
module attributes {stable_mosaic.version = 11 : i64} {
  func.func @_invdyn_kernel(%arg0: i32, %arg1: memref<16x32xf32, #tpu.memory_space<vmem>>, %arg2: memref<16x32xf32, #tpu.memory_space<vmem>>, %arg3: memref<32x128xbf16, #tpu.memory_space<vmem>>, %arg4: memref<32x128xbf16, #tpu.memory_space<vmem>>, %arg5: memref<1x128xf32, #tpu.memory_space<vmem>>, %arg6: memref<128x128xbf16, #tpu.memory_space<vmem>>, %arg7: memref<1x128xf32, #tpu.memory_space<vmem>>, %arg8: memref<128x128xbf16, #tpu.memory_space<vmem>>, %arg9: memref<1x128xf32, #tpu.memory_space<vmem>>, %arg10: memref<16x128xbf16, #tpu.memory_space<vmem>>) attributes {dimension_semantics = [#tpu.dimension_semantics<parallel>], iteration_bounds = array<i64: 1>, scalar_prefetch = 0 : i64, scratch_operands = 0 : i64, tpu.core_type = #tpu.core_type<tc>, window_params = [{transform_indices = @transform_0, window_bounds = array<i64: 16, 32>}, {transform_indices = @transform_1, window_bounds = array<i64: 16, 32>}, {pipeline_mode = #tpu.pipeline_mode<synchronous>, transform_indices = @transform_2, window_bounds = array<i64: 32, 128>}, {pipeline_mode = #tpu.pipeline_mode<synchronous>, transform_indices = @transform_3, window_bounds = array<i64: 32, 128>}, {pipeline_mode = #tpu.pipeline_mode<synchronous>, transform_indices = @transform_4, window_bounds = array<i64: 1, 128>}, {pipeline_mode = #tpu.pipeline_mode<synchronous>, transform_indices = @transform_5, window_bounds = array<i64: 128, 128>}, {pipeline_mode = #tpu.pipeline_mode<synchronous>, transform_indices = @transform_6, window_bounds = array<i64: 1, 128>}, {pipeline_mode = #tpu.pipeline_mode<synchronous>, transform_indices = @transform_7, window_bounds = array<i64: 128, 128>}, {pipeline_mode = #tpu.pipeline_mode<synchronous>, transform_indices = @transform_8, window_bounds = array<i64: 1, 128>}, {transform_indices = @transform_9, window_bounds = array<i64: 16, 128>}]} {
    %c0 = arith.constant 0 : index
    %c0_0 = arith.constant 0 : index
    %0 = vector.load %arg1[%c0, %c0_0] : memref<16x32xf32, #tpu.memory_space<vmem>>, vector<16x32xf32>
    %1 = arith.truncf %0 : vector<16x32xf32> to vector<16x32xbf16>
    %c0_1 = arith.constant 0 : index
    %c0_2 = arith.constant 0 : index
    %2 = vector.load %arg2[%c0_1, %c0_2] : memref<16x32xf32, #tpu.memory_space<vmem>>, vector<16x32xf32>
    %3 = arith.truncf %2 : vector<16x32xf32> to vector<16x32xbf16>
    %c0_3 = arith.constant 0 : index
    %c0_4 = arith.constant 0 : index
    %4 = vector.load %arg3[%c0_3, %c0_4] : memref<32x128xbf16, #tpu.memory_space<vmem>>, vector<32x128xbf16>
    %cst = arith.constant dense<0.000000e+00> : vector<16x128xf32>
    %5 = tpu.matmul %1, %4, %cst {dimension_numbers = #tpu.dot_dimension_numbers<[1], [0], [0], [1], [0, 0, 1, 1], [], []>} : vector<16x32xbf16>, vector<32x128xbf16>, vector<16x128xf32> -> vector<16x128xf32>
    %c0_5 = arith.constant 0 : index
    %c0_6 = arith.constant 0 : index
    %6 = vector.load %arg4[%c0_5, %c0_6] : memref<32x128xbf16, #tpu.memory_space<vmem>>, vector<32x128xbf16>
    %cst_7 = arith.constant dense<0.000000e+00> : vector<16x128xf32>
    %7 = tpu.matmul %3, %6, %cst_7 {dimension_numbers = #tpu.dot_dimension_numbers<[1], [0], [0], [1], [0, 0, 1, 1], [], []>} : vector<16x32xbf16>, vector<32x128xbf16>, vector<16x128xf32> -> vector<16x128xf32>
    %8 = arith.addf %5, %7 : vector<16x128xf32>
    %c0_8 = arith.constant 0 : index
    %c0_9 = arith.constant 0 : index
    %9 = vector.load %arg5[%c0_8, %c0_9] : memref<1x128xf32, #tpu.memory_space<vmem>>, vector<1x128xf32>
    %10 = vector.broadcast %9 : vector<1x128xf32> to vector<16x128xf32>
    %11 = arith.addf %8, %10 : vector<16x128xf32>
    %cst_10 = arith.constant 0.000000e+00 : f32
    %12 = vector.broadcast %cst_10 : f32 to vector<16x128xf32>
    %13 = arith.maximumf %11, %12 : vector<16x128xf32>
    %14 = arith.truncf %13 : vector<16x128xf32> to vector<16x128xbf16>
    %c0_11 = arith.constant 0 : index
    %c0_12 = arith.constant 0 : index
    %15 = vector.load %arg6[%c0_11, %c0_12] : memref<128x128xbf16, #tpu.memory_space<vmem>>, vector<128x128xbf16>
    %cst_13 = arith.constant dense<0.000000e+00> : vector<16x128xf32>
    %16 = tpu.matmul %14, %15, %cst_13 {dimension_numbers = #tpu.dot_dimension_numbers<[1], [0], [0], [1], [0, 0, 1, 1], [], []>} : vector<16x128xbf16>, vector<128x128xbf16>, vector<16x128xf32> -> vector<16x128xf32>
    %c0_14 = arith.constant 0 : index
    %c0_15 = arith.constant 0 : index
    %17 = vector.load %arg7[%c0_14, %c0_15] : memref<1x128xf32, #tpu.memory_space<vmem>>, vector<1x128xf32>
    %18 = vector.broadcast %17 : vector<1x128xf32> to vector<16x128xf32>
    %19 = arith.addf %16, %18 : vector<16x128xf32>
    %cst_16 = arith.constant 0.000000e+00 : f32
    %20 = vector.broadcast %cst_16 : f32 to vector<16x128xf32>
    %21 = arith.maximumf %19, %20 : vector<16x128xf32>
    %22 = arith.truncf %21 : vector<16x128xf32> to vector<16x128xbf16>
    %c0_17 = arith.constant 0 : index
    %c0_18 = arith.constant 0 : index
    %23 = vector.load %arg8[%c0_17, %c0_18] : memref<128x128xbf16, #tpu.memory_space<vmem>>, vector<128x128xbf16>
    %cst_19 = arith.constant dense<0.000000e+00> : vector<16x128xf32>
    %24 = tpu.matmul %22, %23, %cst_19 {dimension_numbers = #tpu.dot_dimension_numbers<[1], [0], [0], [1], [0, 0, 1, 1], [], []>} : vector<16x128xbf16>, vector<128x128xbf16>, vector<16x128xf32> -> vector<16x128xf32>
    %c0_20 = arith.constant 0 : index
    %c0_21 = arith.constant 0 : index
    %25 = vector.load %arg9[%c0_20, %c0_21] : memref<1x128xf32, #tpu.memory_space<vmem>>, vector<1x128xf32>
    %26 = vector.broadcast %25 : vector<1x128xf32> to vector<16x128xf32>
    %27 = arith.addf %24, %26 : vector<16x128xf32>
    %28 = arith.truncf %27 : vector<16x128xf32> to vector<16x128xbf16>
    %c0_22 = arith.constant 0 : index
    %c0_23 = arith.constant 0 : index
    %29 = vector.load %arg10[%c0_22, %c0_23] : memref<16x128xbf16, #tpu.memory_space<vmem>>, vector<16x128xbf16>
    tpu.vector_store %arg10[%c0_22, %c0_23], %28 {strides = array<i32>} : memref<16x128xbf16, #tpu.memory_space<vmem>>, vector<16x128xbf16>,
    return
  }
  func.func @transform_0(%arg0: i32) -> (i32, i32) {
    %c0_i32 = arith.constant 0 : i32
    %c0_i32_0 = arith.constant 0 : i32
    return %arg0, %c0_i32 : i32, i32
  }
  func.func @transform_1(%arg0: i32) -> (i32, i32) {
    %c0_i32 = arith.constant 0 : i32
    %c0_i32_0 = arith.constant 0 : i32
    return %arg0, %c0_i32 : i32, i32
  }
  func.func @transform_2(%arg0: i32) -> (i32, i32) {
    %c0_i32 = arith.constant 0 : i32
    %c0_i32_0 = arith.constant 0 : i32
    %c0_i32_1 = arith.constant 0 : i32
    return %c0_i32, %c0_i32_0 : i32, i32
  }
  func.func @transform_3(%arg0: i32) -> (i32, i32) {
    %c0_i32 = arith.constant 0 : i32
    %c0_i32_0 = arith.constant 0 : i32
    %c0_i32_1 = arith.constant 0 : i32
    return %c0_i32, %c0_i32_0 : i32, i32
  }
  func.func @transform_4(%arg0: i32) -> (i32, i32) {
    %c0_i32 = arith.constant 0 : i32
    %c0_i32_0 = arith.constant 0 : i32
    %c0_i32_1 = arith.constant 0 : i32
    return %c0_i32, %c0_i32_0 : i32, i32
  }
  func.func @transform_5(%arg0: i32) -> (i32, i32) {
    %c0_i32 = arith.constant 0 : i32
    %c0_i32_0 = arith.constant 0 : i32
    %c0_i32_1 = arith.constant 0 : i32
    return %c0_i32, %c0_i32_0 : i32, i32
  }
  func.func @transform_6(%arg0: i32) -> (i32, i32) {
    %c0_i32 = arith.constant 0 : i32
    %c0_i32_0 = arith.constant 0 : i32
    %c0_i32_1 = arith.constant 0 : i32
    return %c0_i32, %c0_i32_0 : i32, i32
  }
  func.func @transform_7(%arg0: i32) -> (i32, i32) {
    %c0_i32 = arith.constant 0 : i32
    %c0_i32_0 = arith.constant 0 : i32
    %c0_i32_1 = arith.constant 0 : i32
    return %c0_i32, %c0_i32_0 : i32, i32
  }
  func.func @transform_8(%arg0: i32) -> (i32, i32) {
    %c0_i32 = arith.constant 0 : i32
    %c0_i32_0 = arith.constant 0 : i32
    %c0_i32_1 = arith.constant 0 : i32
    return %c0_i32, %c0_i32_0 : i32, i32
  }
  func.func @transform_9(%arg0: i32) -> (i32, i32) {
    %c0_i32 = arith.constant 0 : i32
    %c0_i32_0 = arith.constant 0 : i32
    return %arg0, %c0_i32 : i32, i32
  }
}

</mosaic_0001>

<llo_original>
// kernel: inverse_dynamic_forward.1
$region0: #{inverse_dynamic_forward.1}
  #allocation0 [shape = 'u32[]', space=smem, size = 0x4, offset = 0x4, fixed_abs, tag = 'smem constant byte address 0x4 - core index']
  #allocation1 [shape = 'u32[144,128]{1,0:T(1,128)}', space=vmem, size = 0x12000, scoped, tag = 'internal scratch']
  %s0 = inlined_call_operand.vmem [shape: f32[16,32], index: 0, kind: input, shape index: {}]
  %s1 = inlined_call_operand.vmem [shape: f32[16,32], index: 1, kind: input, shape index: {}]
  %s2 = inlined_call_operand.vmem [shape: bf16[32,128], index: 2, kind: input, shape index: {}]
  %s3 = inlined_call_operand.vmem [shape: bf16[32,128], index: 3, kind: input, shape index: {}]
  %s4 = inlined_call_operand.vmem [shape: f32[1,128], index: 4, kind: input, shape index: {}]
  %s5 = inlined_call_operand.hbm [shape: bf16[128,128], index: 5, kind: input, shape index: {}]
  %s6 = inlined_call_operand.vmem [shape: f32[1,128], index: 6, kind: input, shape index: {}]
  %s7 = inlined_call_operand.hbm [shape: bf16[128,128], index: 7, kind: input, shape index: {}]
  %s8 = inlined_call_operand.vmem [shape: f32[1,128], index: 8, kind: input, shape index: {}]
  %s9 = inlined_call_operand.vmem [shape: bf16[16,128], index: 9, kind: output, shape index: {}]
  %s10 = sld [smem:[#allocation0]]
  $region54: #{inverse_dynamic_forward.1} parent=0
    _
  %s12 = ssub.s32 1, %s10
  %s13 = scalar_select 0, %s12, %s10
  $region1: #{inverse_dynamic_forward.1} parent=0
    #allocation2 [shape = 'u8[32768]{0}', space=vmem, size = 0x8000, scoped, tag = 'input window, operand 5, single buffered']
    #allocation3 [shape = 's32[1]{0}', space=sflag, size = 0x4, scoped, tag = 'scoped memory for inverse_dynamic_forward.1']
    #allocation4 [shape = 'u8[32768]{0}', space=vmem, size = 0x8000, scoped, tag = 'input window, operand 7, single buffered']
    #allocation5 [shape = 's32[1]{0}', space=sflag, size = 0x4, scoped, tag = 'scoped memory for inverse_dynamic_forward.1']
    %14 = vsyncpa [#allocation3], 0
    %15 = vsyncpa [#allocation5], 0
    // Predicated region
    $region2: #{inverse_dynamic_forward.1} parent=1 // pred_check
      _
    $region3: #{inverse_dynamic_forward.1} parent=1 // pred_check_branch
      %17 = sbr.rel (0) target = $region5
    $region4: #{inverse_dynamic_forward.1} parent=1 // pred_region
      _
    $region5: #{inverse_dynamic_forward.1} parent=1 // pred_fallthru
      _
    // Predicated region
    $region6: #{inverse_dynamic_forward.1} parent=1 // pred_check
      _
    $region7: #{inverse_dynamic_forward.1} parent=1 // pred_check_branch
      %19 = sbr.rel (0) target = $region9
    $region8: #{inverse_dynamic_forward.1} parent=1 // pred_region
      _
    $region9: #{inverse_dynamic_forward.1} parent=1 // pred_fallthru
      _
    // Predicated region
    $region10: #{inverse_dynamic_forward.1} parent=1 // pred_check
      _
    $region11: #{inverse_dynamic_forward.1} parent=1 // pred_check_branch
      %21 = sbr.rel (0) target = $region13
    $region12: #{inverse_dynamic_forward.1} parent=1 // pred_region
      _
    $region13: #{inverse_dynamic_forward.1} parent=1 // pred_fallthru
      _
    // Predicated region
    $region14: #{inverse_dynamic_forward.1} parent=1 // pred_check
      _
    $region15: #{inverse_dynamic_forward.1} parent=1 // pred_check_branch
      %23 = sbr.rel (0) target = $region17
    $region16: #{inverse_dynamic_forward.1} parent=1 // pred_region
      _
    $region17: #{inverse_dynamic_forward.1} parent=1 // pred_fallthru
      _
    // Predicated region
    $region18: #{inverse_dynamic_forward.1} parent=1 // pred_check
      _
    $region19: #{inverse_dynamic_forward.1} parent=1 // pred_check_branch
      %25 = sbr.rel (0) target = $region21
    $region20: #{inverse_dynamic_forward.1} parent=1 // pred_region
      _
    $region21: #{inverse_dynamic_forward.1} parent=1 // pred_fallthru
      _
    // Predicated region
    $region22: #{inverse_dynamic_forward.1} parent=1 // pred_check
      _
    $region23: #{inverse_dynamic_forward.1} parent=1 // pred_check_branch
      %27 = sbr.rel (0) target = $region25
    $region24: #{inverse_dynamic_forward.1} parent=1 // pred_region
      %s29 = ssub.s32 1024, 1024
      %30 = vsyncadd [#allocation3], %s29
      %s31 = sshll.u32 [#allocation2], 4
      %s32 = int_to_ptr.vmem [resolvable:$true] %s31
      %37 = dma.hbm_to_vmem [thread:$0]  %s5, 1024, %s32, [#allocation3], 64, 64, 4
    $region25: #{inverse_dynamic_forward.1} parent=1 // pred_fallthru
      _
    // Predicated region
    $region26: #{inverse_dynamic_forward.1} parent=1 // pred_check
      _
    $region27: #{inverse_dynamic_forward.1} parent=1 // pred_check_branch
      %39 = sbr.rel (0) target = $region29
    $region28: #{inverse_dynamic_forward.1} parent=1 // pred_region
      _
    $region29: #{inverse_dynamic_forward.1} parent=1 // pred_fallthru
      _
    // Predicated region
    $region30: #{inverse_dynamic_forward.1} parent=1 // pred_check
      _
    $region31: #{inverse_dynamic_forward.1} parent=1 // pred_check_branch
      %41 = sbr.rel (0) target = $region33
    $region32: #{inverse_dynamic_forward.1} parent=1 // pred_region
      %s43 = ssub.s32 1024, 1024
      %44 = vsyncadd [#allocation5], %s43
      %s45 = sshll.u32 [#allocation4], 4
      %s46 = int_to_ptr.vmem [resolvable:$true] %s45
      %51 = dma.hbm_to_vmem [thread:$0]  %s7, 1024, %s46, [#allocation5], 64, 64, 4
    $region33: #{inverse_dynamic_forward.1} parent=1 // pred_fallthru
      _
    // Predicated region
    $region34: #{inverse_dynamic_forward.1} parent=1 // pred_check
      _
    $region35: #{inverse_dynamic_forward.1} parent=1 // pred_check_branch
      %53 = sbr.rel (0) target = $region37
    $region36: #{inverse_dynamic_forward.1} parent=1 // pred_region
      _
    $region37: #{inverse_dynamic_forward.1} parent=1 // pred_fallthru
      _
    // Predicated region
    $region38: #{inverse_dynamic_forward.1} parent=1 // pred_check
      _
    $region39: #{inverse_dynamic_forward.1} parent=1 // pred_check_branch
      %55 = sbr.rel (0) target = $region41
    $region40: #{inverse_dynamic_forward.1} parent=1 // pred_region
      %56 = dma.done [#allocation3], 1024
    $region41: #{inverse_dynamic_forward.1} parent=1 // pred_fallthru
      _
    // Predicated region
    $region42: #{inverse_dynamic_forward.1} parent=1 // pred_check
      _
    $region43: #{inverse_dynamic_forward.1} parent=1 // pred_check_branch
      %58 = sbr.rel (0) target = $region45
    $region44: #{inverse_dynamic_forward.1} parent=1 // pred_region
      %59 = dma.done [#allocation5], 1024
    $region45: #{inverse_dynamic_forward.1} parent=1 // pred_fallthru
      _
    %v61 = vld [vmem:[%s0] sm:$0xff]
    %v62 = vld [vmem:[%s0 + $0x8] sm:$0xff]
    %v63 = vpack.c.bf16 %v62, %v61
    %v64 = vld [vmem:[%s1] sm:$0xff]
    %v65 = vld [vmem:[%s1 + $0x8] sm:$0xff]
    %v66 = vpack.c.bf16 %v65, %v64
    %v67 = vld [vmem:[%s2] sm:$0xf]
    %v68 = vld [vmem:[%s2 + $0x4] sm:$0xf]
    %v69 = vld [vmem:[%s2 + $0x8] sm:$0xf]
    %v70 = vld [vmem:[%s2 + $0xc] sm:$0xf]
    %v71 = vld [vmem:[%s3] sm:$0xf]
    %v72 = vld [vmem:[%s3 + $0x4] sm:$0xf]
    %v73 = vld [vmem:[%s3 + $0x8] sm:$0xf]
    %v74 = vld [vmem:[%s3 + $0xc] sm:$0xf]
    %v79 = vunpack.c.l.b16 %v71
    %v80 = vunpack.c.l.b16 %v72
    %v81 = vunpack.c.l.b16 %v73
    %v82 = vunpack.c.l.b16 %v74
    %v83 = vpack.c.b16 %v80, %v79
    %v84 = vpack.c.b16 %v82, %v81
    %vm87 = vcmask 261120
    %v89 = vsel %vm87, %v66, 0
    %91 = vmatprep.subr.bf16.mxu0 0
    %92 = vmatpush1.bf16.msra.mxu0 0
    %93 = vmatprep.subr.bf16.mxu0 0
    %94 = vmatpush1.bf16.msra.mxu0 0
    %95 = vmatprep.subr.bf16.mxu0 0
    %96 = vmatpush1.bf16.msra.mxu0 0
    %97 = vmatprep.subr.bf16.mxu0 0
    %98 = vmatpush1.bf16.msra.mxu0 0
    %99 = vmatprep.subr.bf16.mxu0 0
    %100 = vmatpush1.bf16.msra.mxu0 0
    %101 = vmatprep.subr.bf16.mxu0 0
    %102 = vmatpush1.bf16.msra.mxu0 0
    %103 = vmatprep.subr.bf16.mxu0 0
    %104 = vmatpush1.bf16.msra.mxu0 %v84
    %105 = vmatprep.subr.bf16.mxu0 0
    %106 = vmatpush1.bf16.msra.mxu0 %v83
    %107 = vmatprep.subr.bf16.mxu0 0
    %108 = vmatpush2.bf16.msra.mxu0 0
    %109 = vmatprep.subr.bf16.mxu0 0
    %110 = vmatpush2.bf16.msra.mxu0 0
    %111 = vmatprep.subr.bf16.mxu0 0
    %112 = vmatpush2.bf16.msra.mxu0 0
    %113 = vmatprep.subr.bf16.mxu0 0
    %114 = vmatpush2.bf16.msra.mxu0 0
    %115 = vmatprep.subr.bf16.mxu0 0
    %116 = vmatpush2.bf16.msra.mxu0 0
    %117 = vmatprep.subr.bf16.mxu0 0
    %118 = vmatpush2.bf16.msra.mxu0 0
    %119 = vmatprep.subr.bf16.mxu0 0
    %120 = vmatpush2.bf16.msra.mxu0 0
    %121 = vmatprep.subr.bf16.mxu0 0
    %122 = vmatpush2.bf16.msra.mxu0 0
    %123 = vmatprep.mubr.bf16.mxu0 0
    %124 = vmatmul.mubr.bf16.gmra.mxu0 %v89
    %v125 = vpop.f32.mrf.mxu0
    %v126 = vadd.f32 0.0, %v125
    %v127 = vpop.f32.mrf.mxu0
    %v128 = vpop.f32.mrf.mxu0
    %v129 = vadd.f32 0.0, %v128
    %v130 = vpop.f32.mrf.mxu0
    %131 = vdwg.mxu0
    %v136 = vunpack.c.l.b16 %v67
    %v137 = vunpack.c.l.b16 %v68
    %v138 = vunpack.c.l.b16 %v69
    %v139 = vunpack.c.l.b16 %v70
    %v140 = vpack.c.b16 %v137, %v136
    %v141 = vpack.c.b16 %v139, %v138
    %v145 = vsel %vm87, %v63, 0
    %147 = vmatprep.subr.bf16.mxu0 0
    %148 = vmatpush1.bf16.msra.mxu0 0
    %149 = vmatprep.subr.bf16.mxu0 0
    %150 = vmatpush1.bf16.msra.mxu0 0
    %151 = vmatprep.subr.bf16.mxu0 0
    %152 = vmatpush1.bf16.msra.mxu0 0
    %153 = vmatprep.subr.bf16.mxu0 0
    %154 = vmatpush1.bf16.msra.mxu0 0
    %155 = vmatprep.subr.bf16.mxu0 0
    %156 = vmatpush1.bf16.msra.mxu0 0
    %157 = vmatprep.subr.bf16.mxu0 0
    %158 = vmatpush1.bf16.msra.mxu0 0
    %159 = vmatprep.subr.bf16.mxu0 0
    %160 = vmatpush1.bf16.msra.mxu0 %v141
    %161 = vmatprep.subr.bf16.mxu0 0
    %162 = vmatpush1.bf16.msra.mxu0 %v140
    %163 = vmatprep.subr.bf16.mxu0 0
    %164 = vmatpush2.bf16.msra.mxu0 0
    %165 = vmatprep.subr.bf16.mxu0 0
    %166 = vmatpush2.bf16.msra.mxu0 0
    %167 = vmatprep.subr.bf16.mxu0 0
    %168 = vmatpush2.bf16.msra.mxu0 0
    %169 = vmatprep.subr.bf16.mxu0 0
    %170 = vmatpush2.bf16.msra.mxu0 0
    %171 = vmatprep.subr.bf16.mxu0 0
    %172 = vmatpush2.bf16.msra.mxu0 0
    %173 = vmatprep.subr.bf16.mxu0 0
    %174 = vmatpush2.bf16.msra.mxu0 0
    %175 = vmatprep.subr.bf16.mxu0 0
    %176 = vmatpush2.bf16.msra.mxu0 0
    %177 = vmatprep.subr.bf16.mxu0 0
    %178 = vmatpush2.bf16.msra.mxu0 0
    %179 = vmatprep.mubr.bf16.mxu0 0
    %180 = vmatmul.mubr.bf16.gmra.mxu0 %v145
    %v181 = vpop.f32.mrf.mxu0
    %v182 = vadd.f32 %v126, %v181
    %v183 = vpop.f32.mrf.mxu0
    %v184 = vpop.f32.mrf.mxu0
    %v185 = vadd.f32 %v129, %v184
    %v186 = vpop.f32.mrf.mxu0
    %187 = vdwg.mxu0
    %v188 = vld [vmem:[%s4] sm:$0x1]
    %v190 = vlaneseq
    %v191 = vshrl.u32 %v190, 7
    %v192 = vsub.s32 0, %v191
    %v193 = vrot.slane %v188, %v192
    %v195 = vadd.f32 %v182, %v193
    %v196 = vadd.f32 %v185, %v193
    %v197 = vmax.f32 %v195, 0.0
    %v198 = vmax.f32 %v196, 0.0
    %v199 = vpack.c.bf16 %v198, %v197
    %v200 = vld [vmem:[#allocation2] sm:$0xf]
    %v201 = vld [vmem:[#allocation2 + $0x4] sm:$0xf]
    %v202 = vld [vmem:[#allocation2 + $0x8] sm:$0xf]
    %v203 = vld [vmem:[#allocation2 + $0xc] sm:$0xf]
    %v204 = vld [vmem:[#allocation2 + $0x10] sm:$0xf]
    %v205 = vld [vmem:[#allocation2 + $0x14] sm:$0xf]
    %v206 = vld [vmem:[#allocation2 + $0x18] sm:$0xf]
    %v207 = vld [vmem:[#allocation2 + $0x1c] sm:$0xf]
    %v208 = vld [vmem:[#allocation2 + $0x20] sm:$0xf]
    %v209 = vld [vmem:[#allocation2 + $0x24] sm:$0xf]
    %v210 = vld [vmem:[#allocation2 + $0x28] sm:$0xf]
    %v211 = vld [vmem:[#allocation2 + $0x2c] sm:$0xf]
    %v212 = vld [vmem:[#allocation2 + $0x30] sm:$0xf]
    %v213 = vld [vmem:[#allocation2 + $0x34] sm:$0xf]
    %v214 = vld [vmem:[#allocation2 + $0x38] sm:$0xf]
    %v215 = vld [vmem:[#allocation2 + $0x3c] sm:$0xf]
    %v216 = vld [vmem:[%s6] sm:$0x1]
    %v218 = vlaneseq
    %v219 = vshrl.u32 %v218, 7
    %v220 = vsub.s32 0, %v219
    %v221 = vrot.slane %v216, %v220
    %v239 = vunpack.c.l.b16 %v200
    %v240 = vunpack.c.l.b16 %v201
    %v241 = vunpack.c.l.b16 %v202
    %v242 = vunpack.c.l.b16 %v203
    %v243 = vunpack.c.l.b16 %v204
    %v244 = vunpack.c.l.b16 %v205
    %v245 = vunpack.c.l.b16 %v206
    %v246 = vunpack.c.l.b16 %v207
    %v247 = vunpack.c.l.b16 %v208
    %v248 = vunpack.c.l.b16 %v209
    %v249 = vunpack.c.l.b16 %v210
    %v250 = vunpack.c.l.b16 %v211
    %v251 = vunpack.c.l.b16 %v212
    %v252 = vunpack.c.l.b16 %v213
    %v253 = vunpack.c.l.b16 %v214
    %v254 = vunpack.c.l.b16 %v215
    %v255 = vpack.c.b16 %v240, %v239
    %v256 = vpack.c.b16 %v242, %v241
    %v257 = vpack.c.b16 %v244, %v243
    %v258 = vpack.c.b16 %v246, %v245
    %v259 = vpack.c.b16 %v248, %v247
    %v260 = vpack.c.b16 %v250, %v249
    %v261 = vpack.c.b16 %v252, %v251
    %v262 = vpack.c.b16 %v254, %v253
    %271 = vmatprep.subr.bf16.mxu0 0
    %272 = vmatpush1.bf16.msra.mxu0 %v262
    %273 = vmatprep.subr.bf16.mxu0 0
    %274 = vmatpush1.bf16.msra.mxu0 %v261
    %275 = vmatprep.subr.bf16.mxu0 0
    %276 = vmatpush1.bf16.msra.mxu0 %v260
    %277 = vmatprep.subr.bf16.mxu0 0
    %278 = vmatpush1.bf16.msra.mxu0 %v259
    %279 = vmatprep.subr.bf16.mxu0 0
    %280 = vmatpush1.bf16.msra.mxu0 %v258
    %281 = vmatprep.subr.bf16.mxu0 0
    %282 = vmatpush1.bf16.msra.mxu0 %v257
    %283 = vmatprep.subr.bf16.mxu0 0
    %284 = vmatpush1.bf16.msra.mxu0 %v256
    %285 = vmatprep.subr.bf16.mxu0 0
    %286 = vmatpush1.bf16.msra.mxu0 %v255
    %287 = vmatprep.subr.bf16.mxu0 0
    %288 = vmatpush2.bf16.msra.mxu0 0
    %289 = vmatprep.subr.bf16.mxu0 0
    %290 = vmatpush2.bf16.msra.mxu0 0
    %291 = vmatprep.subr.bf16.mxu0 0
    %292 = vmatpush2.bf16.msra.mxu0 0
    %293 = vmatprep.subr.bf16.mxu0 0
    %294 = vmatpush2.bf16.msra.mxu0 0
    %295 = vmatprep.subr.bf16.mxu0 0
    %296 = vmatpush2.bf16.msra.mxu0 0
    %297 = vmatprep.subr.bf16.mxu0 0
    %298 = vmatpush2.bf16.msra.mxu0 0
    %299 = vmatprep.subr.bf16.mxu0 0
    %300 = vmatpush2.bf16.msra.mxu0 0
    %301 = vmatprep.subr.bf16.mxu0 0
    %302 = vmatpush2.bf16.msra.mxu0 0
    %303 = vmatprep.mubr.bf16.mxu0 0
    %304 = vmatmul.mubr.bf16.gmra.mxu0 %v199
    %v305 = vpop.f32.mrf.mxu0
    %v306 = vadd.f32 %v221, %v305
    %v307 = vpop.f32.mrf.mxu0
    %v308 = vpop.f32.mrf.mxu0
    %v309 = vadd.f32 %v221, %v308
    %v310 = vpop.f32.mrf.mxu0
    %311 = vdwg.mxu0
    %v312 = vmax.f32 %v306, 0.0
    %v313 = vmax.f32 %v309, 0.0
    %v314 = vpack.c.bf16 %v313, %v312
    %v315 = vld [vmem:[#allocation4] sm:$0xf]
    %v316 = vld [vmem:[#allocation4 + $0x4] sm:$0xf]
    %v317 = vld [vmem:[#allocation4 + $0x8] sm:$0xf]
    %v318 = vld [vmem:[#allocation4 + $0xc] sm:$0xf]
    %v319 = vld [vmem:[#allocation4 + $0x10] sm:$0xf]
    %v320 = vld [vmem:[#allocation4 + $0x14] sm:$0xf]
    %v321 = vld [vmem:[#allocation4 + $0x18] sm:$0xf]
    %v322 = vld [vmem:[#allocation4 + $0x1c] sm:$0xf]
    %v323 = vld [vmem:[#allocation4 + $0x20] sm:$0xf]
    %v324 = vld [vmem:[#allocation4 + $0x24] sm:$0xf]
    %v325 = vld [vmem:[#allocation4 + $0x28] sm:$0xf]
    %v326 = vld [vmem:[#allocation4 + $0x2c] sm:$0xf]
    %v327 = vld [vmem:[#allocation4 + $0x30] sm:$0xf]
    %v328 = vld [vmem:[#allocation4 + $0x34] sm:$0xf]
    %v329 = vld [vmem:[#allocation4 + $0x38] sm:$0xf]
    %v330 = vld [vmem:[#allocation4 + $0x3c] sm:$0xf]
    %v331 = vld [vmem:[%s8] sm:$0x1]
    %v333 = vlaneseq
    %v334 = vshrl.u32 %v333, 7
    %v335 = vsub.s32 0, %v334
    %v336 = vrot.slane %v331, %v335
    %v354 = vunpack.c.l.b16 %v315
    %v355 = vunpack.c.l.b16 %v316
    %v356 = vunpack.c.l.b16 %v317
    %v357 = vunpack.c.l.b16 %v318
    %v358 = vunpack.c.l.b16 %v319
    %v359 = vunpack.c.l.b16 %v320
    %v360 = vunpack.c.l.b16 %v321
    %v361 = vunpack.c.l.b16 %v322
    %v362 = vunpack.c.l.b16 %v323
    %v363 = vunpack.c.l.b16 %v324
    %v364 = vunpack.c.l.b16 %v325
    %v365 = vunpack.c.l.b16 %v326
    %v366 = vunpack.c.l.b16 %v327
    %v367 = vunpack.c.l.b16 %v328
    %v368 = vunpack.c.l.b16 %v329
    %v369 = vunpack.c.l.b16 %v330
    %v370 = vpack.c.b16 %v355, %v354
    %v371 = vpack.c.b16 %v357, %v356
    %v372 = vpack.c.b16 %v359, %v358
    %v373 = vpack.c.b16 %v361, %v360
    %v374 = vpack.c.b16 %v363, %v362
    %v375 = vpack.c.b16 %v365, %v364
    %v376 = vpack.c.b16 %v367, %v366
    %v377 = vpack.c.b16 %v369, %v368
    %386 = vmatprep.subr.bf16.mxu0 0
    %387 = vmatpush1.bf16.msra.mxu0 %v377
    %388 = vmatprep.subr.bf16.mxu0 0
    %389 = vmatpush1.bf16.msra.mxu0 %v376
    %390 = vmatprep.subr.bf16.mxu0 0
    %391 = vmatpush1.bf16.msra.mxu0 %v375
    %392 = vmatprep.subr.bf16.mxu0 0
    %393 = vmatpush1.bf16.msra.mxu0 %v374
    %394 = vmatprep.subr.bf16.mxu0 0
    %395 = vmatpush1.bf16.msra.mxu0 %v373
    %396 = vmatprep.subr.bf16.mxu0 0
    %397 = vmatpush1.bf16.msra.mxu0 %v372
    %398 = vmatprep.subr.bf16.mxu0 0
    %399 = vmatpush1.bf16.msra.mxu0 %v371
    %400 = vmatprep.subr.bf16.mxu0 0
    %401 = vmatpush1.bf16.msra.mxu0 %v370
    %402 = vmatprep.subr.bf16.mxu0 0
    %403 = vmatpush2.bf16.msra.mxu0 0
    %404 = vmatprep.subr.bf16.mxu0 0
    %405 = vmatpush2.bf16.msra.mxu0 0
    %406 = vmatprep.subr.bf16.mxu0 0
    %407 = vmatpush2.bf16.msra.mxu0 0
    %408 = vmatprep.subr.bf16.mxu0 0
    %409 = vmatpush2.bf16.msra.mxu0 0
    %410 = vmatprep.subr.bf16.mxu0 0
    %411 = vmatpush2.bf16.msra.mxu0 0
    %412 = vmatprep.subr.bf16.mxu0 0
    %413 = vmatpush2.bf16.msra.mxu0 0
    %414 = vmatprep.subr.bf16.mxu0 0
    %415 = vmatpush2.bf16.msra.mxu0 0
    %416 = vmatprep.subr.bf16.mxu0 0
    %417 = vmatpush2.bf16.msra.mxu0 0
    %418 = vmatprep.mubr.bf16.mxu0 0
    %419 = vmatmul.mubr.bf16.gmra.mxu0 %v314
    %v420 = vpop.f32.mrf.mxu0
    %v421 = vadd.f32 %v336, %v420
    %v422 = vpop.f32.mrf.mxu0
    %v423 = vpop.f32.mrf.mxu0
    %v424 = vadd.f32 %v336, %v423
    %v425 = vpop.f32.mrf.mxu0
    %426 = vdwg.mxu0
    %v427 = vpack.c.bf16 %v424, %v421
    %v429 = vunpack.c.l.b16 %v427
    %v430 = vunpack.c.h.b16 %v427
    %v431 = vpack.c.b16 %v429, %v429
    %v432 = vpack.c.b16 %v430, %v430
    %435 = vst [vmem:[%s9] sm:$0xf] %v431
    %436 = vst [vmem:[%s9 + $0x4] sm:$0xf] %v432
    // Predicated region
    $region46: #{inverse_dynamic_forward.1} parent=1 // pred_check
      _
    $region47: #{inverse_dynamic_forward.1} parent=1 // pred_check_branch
      %438 = sbr.rel (0) target = $region49
    $region48: #{inverse_dynamic_forward.1} parent=1 // pred_region
      _
    $region49: #{inverse_dynamic_forward.1} parent=1 // pred_fallthru
      _
    // Predicated region
    $region50: #{inverse_dynamic_forward.1} parent=1 // pred_check
      _
    $region51: #{inverse_dynamic_forward.1} parent=1 // pred_check_branch
      %440 = sbr.rel (0) target = $region53
    $region52: #{inverse_dynamic_forward.1} parent=1 // pred_region
      _
    $region53: #{inverse_dynamic_forward.1} parent=1 // pred_fallthru
      _
    %441 = vsyncpa [#allocation3], 1
    %442 = vsyncpa [#allocation5], 1

</llo_original>
